<compile_context>
chip_gen: v5e
topology: v5e:2x2
jax: 0.10.0
libtpu: 0.0.40
codegen_flags: <defaults>
</compile_context>

<pallas_src>
import numpy as np
import jax
import jax.numpy as jnp
from jax.experimental import pallas as pl
from jax.experimental.pallas import tpu as pltpu


# ---------------- JPEG constants (built host-side, plain numpy) -------------

_LUMA_Q = np.array([
    [16, 11, 10, 16, 24, 40, 51, 61],
    [12, 12, 14, 19, 26, 58, 60, 55],
    [14, 13, 16, 24, 40, 57, 69, 56],
    [14, 17, 22, 29, 51, 87, 80, 62],
    [18, 22, 37, 56, 68, 109, 103, 77],
    [24, 35, 55, 64, 81, 104, 113, 92],
    [49, 64, 78, 87, 103, 121, 120, 101],
    [72, 92, 95, 98, 112, 100, 103, 99],
], dtype=np.float32)

_CHROMA_Q = np.array([
    [17, 18, 24, 47, 99, 99, 99, 99],
    [18, 21, 26, 66, 99, 99, 99, 99],
    [24, 26, 56, 99, 99, 99, 99, 99],
    [47, 66, 99, 99, 99, 99, 99, 99],
    [99, 99, 99, 99, 99, 99, 99, 99],
    [99, 99, 99, 99, 99, 99, 99, 99],
    [99, 99, 99, 99, 99, 99, 99, 99],
    [99, 99, 99, 99, 99, 99, 99, 99],
], dtype=np.float32)


def _quality_scaled_tables(quality: int):
    """libjpeg-style quality scaling of the base quantization tables."""
    quality = max(1, min(100, int(quality)))
    if quality < 50:
        scale = 5000.0 / quality
    else:
        scale = 200.0 - 2.0 * quality

    def scale_tab(t):
        q = np.floor((t * scale + 50.0) / 100.0)
        return np.clip(q, 1.0, 255.0).astype(np.float32)

    return scale_tab(_LUMA_Q), scale_tab(_CHROMA_Q)


def _dct8() -> np.ndarray:
    """Orthonormal 8x8 type-II DCT matrix D such that C = D X D^T."""
    n = np.arange(8, dtype=np.float64)
    k = n[:, None]
    d = np.cos((2.0 * n[None, :] + 1.0) * k * np.pi / 16.0)
    d[0, :] *= np.sqrt(1.0 / 8.0)
    d[1:, :] *= np.sqrt(2.0 / 8.0)
    return d.astype(np.float32)


def _pick_tile(n: int, candidates) -> int:
    for c in candidates:
        if c <= n and n % c == 0:
            return c
    return n


# ------------------------------- Pallas kernel ------------------------------

def jpeg_kernel(x_ref, dh_ref, dht_ref, dwt_ref, dw_ref, q_ref, iq_ref, o_ref):
    # x_ref : (1, 3, TH, TW) in [0, 1]
    # dh/dht: (TH, TH) block-diag row DCT and its (host-built) transpose
    # dwt/dw: (TW, TW) block-diag col DCT transpose / original
    # q/iq  : (3*TH, TW) tiled quant tables (Y;Cb;Cr stacked) and reciprocals
    # o_ref : (1, 3, TH, TW)
    th = dh_ref.shape[0]

    r = x_ref[0, 0]
    g = x_ref[0, 1]
    b = x_ref[0, 2]

    # RGB[0,1] -> level-shifted YCbCr (x255 scale folded into coefficients;
    # the JFIF +128 chroma offset cancels the DCT level shift of -128).
    y = (0.299 * 255.0) * r + (0.587 * 255.0) * g + (0.114 * 255.0) * b - 128.0
    cb = (-0.168736 * 255.0) * r + (-0.331264 * 255.0) * g + (0.5 * 255.0) * b
    cr = (0.5 * 255.0) * r + (-0.418688 * 255.0) * g + (-0.081312 * 255.0) * b

    ycc = jnp.concatenate([y, cb, cr], axis=0)            # (3*TH, TW)

    dh = dh_ref[...]
    dht = dht_ref[...]
    dwt = dwt_ref[...]
    dw = dw_ref[...]

    # Forward blockwise DCT: coeff_ch = DH @ ycc_ch @ DW^T
    # Column direction fused across channels (3x M per MXU pass).
    t = jnp.dot(ycc, dwt, preferred_element_type=jnp.float32)          # (3*TH, TW)
    c0 = jnp.dot(dh, t[0:th], preferred_element_type=jnp.float32)
    c1 = jnp.dot(dh, t[th:2 * th], preferred_element_type=jnp.float32)
    c2 = jnp.dot(dh, t[2 * th:3 * th], preferred_element_type=jnp.float32)
    coeff = jnp.concatenate([c0, c1, c2], axis=0)                      # (3*TH, TW)

    # Quantize / dequantize (reciprocal multiply, no per-element divide).
    cq = jnp.floor(coeff * iq_ref[...] + 0.5) * q_ref[...]

    # Inverse blockwise DCT: rec_ch = DH^T @ cq_ch @ DW
    v = jnp.dot(cq, dw, preferred_element_type=jnp.float32)            # (3*TH, TW)
    ry = jnp.dot(dht, v[0:th], preferred_element_type=jnp.float32) + 128.0
    rcb = jnp.dot(dht, v[th:2 * th], preferred_element_type=jnp.float32)
    rcr = jnp.dot(dht, v[2 * th:3 * th], preferred_element_type=jnp.float32)

    # YCbCr -> RGB, emulate uint8 round-trip, rescale to [0, 1].
    rr = ry + 1.402 * rcr
    gg = ry - 0.344136 * rcb - 0.714136 * rcr
    bb = ry + 1.772 * rcb

    def to_unit(vv):
        return jnp.clip(jnp.floor(vv + 0.5), 0.0, 255.0) * (1.0 / 255.0)

    o_ref[0, 0] = to_unit(rr)
    o_ref[0, 1] = to_unit(gg)
    o_ref[0, 2] = to_unit(bb)


# --------------------------------- wrapper ----------------------------------

def jpeg_compression_attack(x: jax.Array, quality: int = 50) -> jax.Array:
    """x: (B, 3, H, W) float32 in [0, 1]; H, W multiples of 8."""
    B, C, H, W = x.shape
    assert C == 3, "JPEG attack expects RGB (C == 3)"
    assert H % 8 == 0 and W % 8 == 0, "H, W must be multiples of 8"

    # Tile sizes: rows capped at 128 (left-multiply cost ~ TH^2), cols a
    # lane-dense multiple of 128 when possible, else full width.
    TH = _pick_tile(H, (128, 64, 32, 16, 8))
    TW = _pick_tile(W, (256, 128))

    d8 = _dct8()
    # Tile-sized block-diagonal DCT matrices (and host-built transposes).
    DH = np.kron(np.eye(TH // 8, dtype=np.float32), d8)   # (TH, TH)
    DW = np.kron(np.eye(TW // 8, dtype=np.float32), d8)   # (TW, TW)
    DHT = np.ascontiguousarray(DH.T)
    DWT = np.ascontiguousarray(DW.T)

    qy, qc = _quality_scaled_tables(quality)
    qY = np.tile(qy, (TH // 8, TW // 8))
    qC = np.tile(qc, (TH // 8, TW // 8))
    Q = np.concatenate([qY, qC, qC], axis=0).astype(np.float32)   # (3*TH, TW)
    IQ = (1.0 / Q).astype(np.float32)

    grid = (B, H // TH, W // TW)

    return pl.pallas_call(
        jpeg_kernel,
        out_shape=jax.ShapeDtypeStruct((B, 3, H, W), jnp.float32),
        grid_spec=pltpu.PrefetchScalarGridSpec(
            num_scalar_prefetch=0,
            grid=grid,
            in_specs=[
                pl.BlockSpec((1, 3, TH, TW), lambda b, i, j: (b, 0, i, j)),
                pl.BlockSpec((TH, TH), lambda b, i, j: (0, 0)),
                pl.BlockSpec((TH, TH), lambda b, i, j: (0, 0)),
                pl.BlockSpec((TW, TW), lambda b, i, j: (0, 0)),
                pl.BlockSpec((TW, TW), lambda b, i, j: (0, 0)),
                pl.BlockSpec((3 * TH, TW), lambda b, i, j: (0, 0)),
                pl.BlockSpec((3 * TH, TW), lambda b, i, j: (0, 0)),
            ],
            out_specs=pl.BlockSpec((1, 3, TH, TW), lambda b, i, j: (b, 0, i, j)),
        ),
        compiler_params=pltpu.CompilerParams(
            dimension_semantics=("parallel", "parallel", "parallel"),
            vmem_limit_bytes=32 * 1024 * 1024,
        ),
    )(x.astype(jnp.float32), jnp.asarray(DH), jnp.asarray(DHT),
      jnp.asarray(DWT), jnp.asarray(DW), jnp.asarray(Q), jnp.asarray(IQ))


# TODO(synk): real PIL/libjpeg encode (Huffman entropy coding, 4:2:0 chroma
# subsampling, integer DCT) is a byte-stream codec with no Pallas equivalent;
# this kernel implements the standard differentiable-JPEG approximation.


if __name__ == "__main__":
    key = jax.random.PRNGKey(0)
    B, C, H, W = 2, 3, 16, 16
    x = jax.random.uniform(key, (B, C, H, W), dtype=jnp.float32)

    out = jpeg_compression_attack(x, quality=50)
    out = jax.block_until_ready(out)

    assert out.shape == (B, C, H, W)
    assert out.dtype == jnp.float32
    assert bool(jnp.all(jnp.isfinite(out)))
    assert bool(jnp.all(out >= 0.0)) and bool(jnp.all(out <= 1.0))
    print("KERNEL_OK")
</pallas_src>

<mosaic_0001>
module attributes {stable_mosaic.version = 11 : i64} {
  func.func @jpeg_kernel(%arg0: i32, %arg1: i32, %arg2: i32, %arg3: memref<1x3x16x16xf32, #tpu.memory_space<vmem>>, %arg4: memref<16x16xf32, #tpu.memory_space<vmem>>, %arg5: memref<16x16xf32, #tpu.memory_space<vmem>>, %arg6: memref<16x16xf32, #tpu.memory_space<vmem>>, %arg7: memref<16x16xf32, #tpu.memory_space<vmem>>, %arg8: memref<48x16xf32, #tpu.memory_space<vmem>>, %arg9: memref<48x16xf32, #tpu.memory_space<vmem>>, %arg10: memref<1x3x16x16xf32, #tpu.memory_space<vmem>>) attributes {dimension_semantics = [#tpu.dimension_semantics<parallel>, #tpu.dimension_semantics<parallel>, #tpu.dimension_semantics<parallel>], iteration_bounds = array<i64: 2, 1, 1>, scalar_prefetch = 0 : i64, scratch_operands = 0 : i64, tpu.core_type = #tpu.core_type<tc>, window_params = [{transform_indices = @transform_0, window_bounds = array<i64: 1, 3, 16, 16>}, {pipeline_mode = #tpu.pipeline_mode<synchronous>, transform_indices = @transform_1, window_bounds = array<i64: 16, 16>}, {pipeline_mode = #tpu.pipeline_mode<synchronous>, transform_indices = @transform_2, window_bounds = array<i64: 16, 16>}, {pipeline_mode = #tpu.pipeline_mode<synchronous>, transform_indices = @transform_3, window_bounds = array<i64: 16, 16>}, {pipeline_mode = #tpu.pipeline_mode<synchronous>, transform_indices = @transform_4, window_bounds = array<i64: 16, 16>}, {pipeline_mode = #tpu.pipeline_mode<synchronous>, transform_indices = @transform_5, window_bounds = array<i64: 48, 16>}, {pipeline_mode = #tpu.pipeline_mode<synchronous>, transform_indices = @transform_6, window_bounds = array<i64: 48, 16>}, {transform_indices = @transform_7, window_bounds = array<i64: 1, 3, 16, 16>}]} {
    %c0 = arith.constant 0 : index
    %c0_0 = arith.constant 0 : index
    %c0_1 = arith.constant 0 : index
    %c0_2 = arith.constant 0 : index
    %0 = vector.load %arg3[%c0, %c0_0, %c0_1, %c0_2] : memref<1x3x16x16xf32, #tpu.memory_space<vmem>>, vector<1x1x16x16xf32>
    %1 = vector.shape_cast %0 : vector<1x1x16x16xf32> to vector<16x16xf32>
    %c0_3 = arith.constant 0 : index
    %c1 = arith.constant 1 : index
    %c0_4 = arith.constant 0 : index
    %c0_5 = arith.constant 0 : index
    %2 = vector.load %arg3[%c0_3, %c1, %c0_4, %c0_5] : memref<1x3x16x16xf32, #tpu.memory_space<vmem>>, vector<1x1x16x16xf32>
    %3 = vector.shape_cast %2 : vector<1x1x16x16xf32> to vector<16x16xf32>
    %c0_6 = arith.constant 0 : index
    %c2 = arith.constant 2 : index
    %c0_7 = arith.constant 0 : index
    %c0_8 = arith.constant 0 : index
    %4 = vector.load %arg3[%c0_6, %c2, %c0_7, %c0_8] : memref<1x3x16x16xf32, #tpu.memory_space<vmem>>, vector<1x1x16x16xf32>
    %5 = vector.shape_cast %4 : vector<1x1x16x16xf32> to vector<16x16xf32>
    %cst = arith.constant 7.624500e+01 : f32
    %6 = vector.broadcast %cst : f32 to vector<16x16xf32>
    %7 = arith.mulf %6, %1 : vector<16x16xf32>
    %cst_9 = arith.constant 1.496850e+02 : f32
    %8 = vector.broadcast %cst_9 : f32 to vector<16x16xf32>
    %9 = arith.mulf %8, %3 : vector<16x16xf32>
    %10 = arith.addf %7, %9 : vector<16x16xf32>
    %cst_10 = arith.constant 2.907000e+01 : f32
    %11 = vector.broadcast %cst_10 : f32 to vector<16x16xf32>
    %12 = arith.mulf %11, %5 : vector<16x16xf32>
    %13 = arith.addf %10, %12 : vector<16x16xf32>
    %cst_11 = arith.constant 1.280000e+02 : f32
    %14 = vector.broadcast %cst_11 : f32 to vector<16x16xf32>
    %15 = arith.subf %13, %14 : vector<16x16xf32>
    %cst_12 = arith.constant -43.0276794 : f32
    %16 = vector.broadcast %cst_12 : f32 to vector<16x16xf32>
    %17 = arith.mulf %16, %1 : vector<16x16xf32>
    %cst_13 = arith.constant -84.4723205 : f32
    %18 = vector.broadcast %cst_13 : f32 to vector<16x16xf32>
    %19 = arith.mulf %18, %3 : vector<16x16xf32>
    %20 = arith.addf %17, %19 : vector<16x16xf32>
    %cst_14 = arith.constant 1.275000e+02 : f32
    %21 = vector.broadcast %cst_14 : f32 to vector<16x16xf32>
    %22 = arith.mulf %21, %5 : vector<16x16xf32>
    %23 = arith.addf %20, %22 : vector<16x16xf32>
    %cst_15 = arith.constant 1.275000e+02 : f32
    %24 = vector.broadcast %cst_15 : f32 to vector<16x16xf32>
    %25 = arith.mulf %24, %1 : vector<16x16xf32>
    %cst_16 = arith.constant -106.765442 : f32
    %26 = vector.broadcast %cst_16 : f32 to vector<16x16xf32>
    %27 = arith.mulf %26, %3 : vector<16x16xf32>
    %28 = arith.addf %25, %27 : vector<16x16xf32>
    %cst_17 = arith.constant -20.73456 : f32
    %29 = vector.broadcast %cst_17 : f32 to vector<16x16xf32>
    %30 = arith.mulf %29, %5 : vector<16x16xf32>
    %31 = arith.addf %28, %30 : vector<16x16xf32>
    %32 = tpu.concatenate %15, %23, %31 in 0 : vector<16x16xf32>, vector<16x16xf32>, vector<16x16xf32> -> vector<48x16xf32>
    %c0_18 = arith.constant 0 : index
    %c0_19 = arith.constant 0 : index
    %33 = vector.load %arg4[%c0_18, %c0_19] : memref<16x16xf32, #tpu.memory_space<vmem>>, vector<16x16xf32>
    %c0_20 = arith.constant 0 : index
    %c0_21 = arith.constant 0 : index
    %34 = vector.load %arg5[%c0_20, %c0_21] : memref<16x16xf32, #tpu.memory_space<vmem>>, vector<16x16xf32>
    %c0_22 = arith.constant 0 : index
    %c0_23 = arith.constant 0 : index
    %35 = vector.load %arg6[%c0_22, %c0_23] : memref<16x16xf32, #tpu.memory_space<vmem>>, vector<16x16xf32>
    %c0_24 = arith.constant 0 : index
    %c0_25 = arith.constant 0 : index
    %36 = vector.load %arg7[%c0_24, %c0_25] : memref<16x16xf32, #tpu.memory_space<vmem>>, vector<16x16xf32>
    %cst_26 = arith.constant dense<0.000000e+00> : vector<48x16xf32>
    %37 = tpu.matmul %32, %35, %cst_26 {dimension_numbers = #tpu.dot_dimension_numbers<[1], [0], [0], [1], [0, 0, 1, 1], [], []>} : vector<48x16xf32>, vector<16x16xf32>, vector<48x16xf32> -> vector<48x16xf32>
    %38 = vector.extract_strided_slice %37 {offsets = [0, 0], sizes = [16, 16], strides = [1, 1]} : vector<48x16xf32> to vector<16x16xf32>
    %cst_27 = arith.constant dense<0.000000e+00> : vector<16x16xf32>
    %39 = tpu.matmul %33, %38, %cst_27 {dimension_numbers = #tpu.dot_dimension_numbers<[1], [0], [0], [1], [0, 0, 1, 1], [], []>} : vector<16x16xf32>, vector<16x16xf32>, vector<16x16xf32> -> vector<16x16xf32>
    %40 = vector.extract_strided_slice %37 {offsets = [16, 0], sizes = [16, 16], strides = [1, 1]} : vector<48x16xf32> to vector<16x16xf32>
    %cst_28 = arith.constant dense<0.000000e+00> : vector<16x16xf32>
    %41 = tpu.matmul %33, %40, %cst_28 {dimension_numbers = #tpu.dot_dimension_numbers<[1], [0], [0], [1], [0, 0, 1, 1], [], []>} : vector<16x16xf32>, vector<16x16xf32>, vector<16x16xf32> -> vector<16x16xf32>
    %42 = vector.extract_strided_slice %37 {offsets = [32, 0], sizes = [16, 16], strides = [1, 1]} : vector<48x16xf32> to vector<16x16xf32>
    %cst_29 = arith.constant dense<0.000000e+00> : vector<16x16xf32>
    %43 = tpu.matmul %33, %42, %cst_29 {dimension_numbers = #tpu.dot_dimension_numbers<[1], [0], [0], [1], [0, 0, 1, 1], [], []>} : vector<16x16xf32>, vector<16x16xf32>, vector<16x16xf32> -> vector<16x16xf32>
    %44 = tpu.concatenate %39, %41, %43 in 0 : vector<16x16xf32>, vector<16x16xf32>, vector<16x16xf32> -> vector<48x16xf32>
    %c0_30 = arith.constant 0 : index
    %c0_31 = arith.constant 0 : index
    %45 = vector.load %arg9[%c0_30, %c0_31] : memref<48x16xf32, #tpu.memory_space<vmem>>, vector<48x16xf32>
    %46 = arith.mulf %44, %45 : vector<48x16xf32>
    %cst_32 = arith.constant 5.000000e-01 : f32
    %47 = vector.broadcast %cst_32 : f32 to vector<48x16xf32>
    %48 = arith.addf %46, %47 : vector<48x16xf32>
    %49 = math.floor %48 : vector<48x16xf32>
    %c0_33 = arith.constant 0 : index
    %c0_34 = arith.constant 0 : index
    %50 = vector.load %arg8[%c0_33, %c0_34] : memref<48x16xf32, #tpu.memory_space<vmem>>, vector<48x16xf32>
    %51 = arith.mulf %49, %50 : vector<48x16xf32>
    %cst_35 = arith.constant dense<0.000000e+00> : vector<48x16xf32>
    %52 = tpu.matmul %51, %36, %cst_35 {dimension_numbers = #tpu.dot_dimension_numbers<[1], [0], [0], [1], [0, 0, 1, 1], [], []>} : vector<48x16xf32>, vector<16x16xf32>, vector<48x16xf32> -> vector<48x16xf32>
    %53 = vector.extract_strided_slice %52 {offsets = [0, 0], sizes = [16, 16], strides = [1, 1]} : vector<48x16xf32> to vector<16x16xf32>
    %cst_36 = arith.constant dense<0.000000e+00> : vector<16x16xf32>
    %54 = tpu.matmul %34, %53, %cst_36 {dimension_numbers = #tpu.dot_dimension_numbers<[1], [0], [0], [1], [0, 0, 1, 1], [], []>} : vector<16x16xf32>, vector<16x16xf32>, vector<16x16xf32> -> vector<16x16xf32>
    %cst_37 = arith.constant 1.280000e+02 : f32
    %55 = vector.broadcast %cst_37 : f32 to vector<16x16xf32>
    %56 = arith.addf %54, %55 : vector<16x16xf32>
    %57 = vector.extract_strided_slice %52 {offsets = [16, 0], sizes = [16, 16], strides = [1, 1]} : vector<48x16xf32> to vector<16x16xf32>
    %cst_38 = arith.constant dense<0.000000e+00> : vector<16x16xf32>
    %58 = tpu.matmul %34, %57, %cst_38 {dimension_numbers = #tpu.dot_dimension_numbers<[1], [0], [0], [1], [0, 0, 1, 1], [], []>} : vector<16x16xf32>, vector<16x16xf32>, vector<16x16xf32> -> vector<16x16xf32>
    %59 = vector.extract_strided_slice %52 {offsets = [32, 0], sizes = [16, 16], strides = [1, 1]} : vector<48x16xf32> to vector<16x16xf32>
    %cst_39 = arith.constant dense<0.000000e+00> : vector<16x16xf32>
    %60 = tpu.matmul %34, %59, %cst_39 {dimension_numbers = #tpu.dot_dimension_numbers<[1], [0], [0], [1], [0, 0, 1, 1], [], []>} : vector<16x16xf32>, vector<16x16xf32>, vector<16x16xf32> -> vector<16x16xf32>
    %cst_40 = arith.constant 1.402000e+00 : f32
    %61 = vector.broadcast %cst_40 : f32 to vector<16x16xf32>
    %62 = arith.mulf %61, %60 : vector<16x16xf32>
    %63 = arith.addf %56, %62 : vector<16x16xf32>
    %cst_41 = arith.constant 3.441360e-01 : f32
    %64 = vector.broadcast %cst_41 : f32 to vector<16x16xf32>
    %65 = arith.mulf %64, %58 : vector<16x16xf32>
    %66 = arith.subf %56, %65 : vector<16x16xf32>
    %cst_42 = arith.constant 7.141360e-01 : f32
    %67 = vector.broadcast %cst_42 : f32 to vector<16x16xf32>
    %68 = arith.mulf %67, %60 : vector<16x16xf32>
    %69 = arith.subf %66, %68 : vector<16x16xf32>
    %cst_43 = arith.constant 1.772000e+00 : f32
    %70 = vector.broadcast %cst_43 : f32 to vector<16x16xf32>
    %71 = arith.mulf %70, %58 : vector<16x16xf32>
    %72 = arith.addf %56, %71 : vector<16x16xf32>
    %cst_44 = arith.constant 5.000000e-01 : f32
    %73 = vector.broadcast %cst_44 : f32 to vector<16x16xf32>
    %74 = arith.addf %63, %73 : vector<16x16xf32>
    %75 = math.floor %74 : vector<16x16xf32>
    %cst_45 = arith.constant 0.000000e+00 : f32
    %cst_46 = arith.constant 2.550000e+02 : f32
    %76 = vector.broadcast %cst_45 : f32 to vector<16x16xf32>
    %77 = arith.maximumf %76, %75 : vector<16x16xf32>
    %78 = vector.broadcast %cst_46 : f32 to vector<16x16xf32>
    %79 = arith.minimumf %78, %77 : vector<16x16xf32>
    %cst_47 = arith.constant 0.00392156886 : f32
    %80 = vector.broadcast %cst_47 : f32 to vector<16x16xf32>
    %81 = arith.mulf %79, %80 : vector<16x16xf32>
    %c0_48 = arith.constant 0 : index
    %c0_49 = arith.constant 0 : index
    %c0_50 = arith.constant 0 : index
    %c0_51 = arith.constant 0 : index
    %82 = vector.load %arg10[%c0_48, %c0_49, %c0_50, %c0_51] : memref<1x3x16x16xf32, #tpu.memory_space<vmem>>, vector<1x1x16x16xf32>
    %83 = vector.shape_cast %82 : vector<1x1x16x16xf32> to vector<16x16xf32>
    %84 = vector.shape_cast %81 : vector<16x16xf32> to vector<1x1x16x16xf32>
    tpu.vector_store %arg10[%c0_48, %c0_49, %c0_50, %c0_51], %84 {strides = array<i32>} : memref<1x3x16x16xf32, #tpu.memory_space<vmem>>, vector<1x1x16x16xf32>,
    %cst_52 = arith.constant 5.000000e-01 : f32
    %85 = vector.broadcast %cst_52 : f32 to vector<16x16xf32>
    %86 = arith.addf %69, %85 : vector<16x16xf32>
    %87 = math.floor %86 : vector<16x16xf32>
    %cst_53 = arith.constant 0.000000e+00 : f32
    %cst_54 = arith.constant 2.550000e+02 : f32
    %88 = vector.broadcast %cst_53 : f32 to vector<16x16xf32>
    %89 = arith.maximumf %88, %87 : vector<16x16xf32>
    %90 = vector.broadcast %cst_54 : f32 to vector<16x16xf32>
    %91 = arith.minimumf %90, %89 : vector<16x16xf32>
    %cst_55 = arith.constant 0.00392156886 : f32
    %92 = vector.broadcast %cst_55 : f32 to vector<16x16xf32>
    %93 = arith.mulf %91, %92 : vector<16x16xf32>
    %c0_56 = arith.constant 0 : index
    %c1_57 = arith.constant 1 : index
    %c0_58 = arith.constant 0 : index
    %c0_59 = arith.constant 0 : index
    %94 = vector.load %arg10[%c0_56, %c1_57, %c0_58, %c0_59] : memref<1x3x16x16xf32, #tpu.memory_space<vmem>>, vector<1x1x16x16xf32>
    %95 = vector.shape_cast %94 : vector<1x1x16x16xf32> to vector<16x16xf32>
    %96 = vector.shape_cast %93 : vector<16x16xf32> to vector<1x1x16x16xf32>
    tpu.vector_store %arg10[%c0_56, %c1_57, %c0_58, %c0_59], %96 {strides = array<i32>} : memref<1x3x16x16xf32, #tpu.memory_space<vmem>>, vector<1x1x16x16xf32>,
    %cst_60 = arith.constant 5.000000e-01 : f32
    %97 = vector.broadcast %cst_60 : f32 to vector<16x16xf32>
    %98 = arith.addf %72, %97 : vector<16x16xf32>
    %99 = math.floor %98 : vector<16x16xf32>
    %cst_61 = arith.constant 0.000000e+00 : f32
    %cst_62 = arith.constant 2.550000e+02 : f32
    %100 = vector.broadcast %cst_61 : f32 to vector<16x16xf32>
    %101 = arith.maximumf %100, %99 : vector<16x16xf32>
    %102 = vector.broadcast %cst_62 : f32 to vector<16x16xf32>
    %103 = arith.minimumf %102, %101 : vector<16x16xf32>
    %cst_63 = arith.constant 0.00392156886 : f32
    %104 = vector.broadcast %cst_63 : f32 to vector<16x16xf32>
    %105 = arith.mulf %103, %104 : vector<16x16xf32>
    %c0_64 = arith.constant 0 : index
    %c2_65 = arith.constant 2 : index
    %c0_66 = arith.constant 0 : index
    %c0_67 = arith.constant 0 : index
    %106 = vector.load %arg10[%c0_64, %c2_65, %c0_66, %c0_67] : memref<1x3x16x16xf32, #tpu.memory_space<vmem>>, vector<1x1x16x16xf32>
    %107 = vector.shape_cast %106 : vector<1x1x16x16xf32> to vector<16x16xf32>
    %108 = vector.shape_cast %105 : vector<16x16xf32> to vector<1x1x16x16xf32>
    tpu.vector_store %arg10[%c0_64, %c2_65, %c0_66, %c0_67], %108 {strides = array<i32>} : memref<1x3x16x16xf32, #tpu.memory_space<vmem>>, vector<1x1x16x16xf32>,
    return
  }
  func.func @transform_0(%arg0: i32, %arg1: i32, %arg2: i32) -> (i32, i32, i32, i32) {
    %c0_i32 = arith.constant 0 : i32
    %c0_i32_0 = arith.constant 0 : i32
    return %arg0, %c0_i32, %arg1, %arg2 : i32, i32, i32, i32
  }
  func.func @transform_1(%arg0: i32, %arg1: i32, %arg2: i32) -> (i32, i32) {
    %c0_i32 = arith.constant 0 : i32
    %c0_i32_0 = arith.constant 0 : i32
    %c0_i32_1 = arith.constant 0 : i32
    return %c0_i32, %c0_i32_0 : i32, i32
  }
  func.func @transform_2(%arg0: i32, %arg1: i32, %arg2: i32) -> (i32, i32) {
    %c0_i32 = arith.constant 0 : i32
    %c0_i32_0 = arith.constant 0 : i32
    %c0_i32_1 = arith.constant 0 : i32
    return %c0_i32, %c0_i32_0 : i32, i32
  }
  func.func @transform_3(%arg0: i32, %arg1: i32, %arg2: i32) -> (i32, i32) {
    %c0_i32 = arith.constant 0 : i32
    %c0_i32_0 = arith.constant 0 : i32
    %c0_i32_1 = arith.constant 0 : i32
    return %c0_i32, %c0_i32_0 : i32, i32
  }
  func.func @transform_4(%arg0: i32, %arg1: i32, %arg2: i32) -> (i32, i32) {
    %c0_i32 = arith.constant 0 : i32
    %c0_i32_0 = arith.constant 0 : i32
    %c0_i32_1 = arith.constant 0 : i32
    return %c0_i32, %c0_i32_0 : i32, i32
  }
  func.func @transform_5(%arg0: i32, %arg1: i32, %arg2: i32) -> (i32, i32) {
    %c0_i32 = arith.constant 0 : i32
    %c0_i32_0 = arith.constant 0 : i32
    %c0_i32_1 = arith.constant 0 : i32
    return %c0_i32, %c0_i32_0 : i32, i32
  }
  func.func @transform_6(%arg0: i32, %arg1: i32, %arg2: i32) -> (i32, i32) {
    %c0_i32 = arith.constant 0 : i32
    %c0_i32_0 = arith.constant 0 : i32
    %c0_i32_1 = arith.constant 0 : i32
    return %c0_i32, %c0_i32_0 : i32, i32
  }
  func.func @transform_7(%arg0: i32, %arg1: i32, %arg2: i32) -> (i32, i32, i32, i32) {
    %c0_i32 = arith.constant 0 : i32
    %c0_i32_0 = arith.constant 0 : i32
    return %arg0, %c0_i32, %arg1, %arg2 : i32, i32, i32, i32
  }
}

</mosaic_0001>

<llo_original>
// kernel: tpu_custom_call.1
$region0: #{tpu_custom_call.1}
  #allocation0 [shape = 'u32[]', space=smem, size = 0x4, offset = 0x4, fixed_abs, tag = 'smem constant byte address 0x4 - core index']
  #allocation1 [shape = 'u32[72,128]{1,0:T(1,128)}', space=vmem, size = 0x9000, scoped, tag = 'internal scratch']
  %s0 = inlined_call_operand.vmem [shape: f32[2,3,16,16], index: 0, kind: input, shape index: {}]
  %s1 = inlined_call_operand.vmem [shape: f32[16,16], index: 1, kind: input, shape index: {}]
  %s2 = inlined_call_operand.hbm [shape: f32[16,16], index: 2, kind: input, shape index: {}]
  %s3 = inlined_call_operand.hbm [shape: f32[16,16], index: 3, kind: input, shape index: {}]
  %s4 = inlined_call_operand.hbm [shape: f32[16,16], index: 4, kind: input, shape index: {}]
  %s5 = inlined_call_operand.vmem [shape: f32[48,16], index: 5, kind: input, shape index: {}]
  %s6 = inlined_call_operand.vmem [shape: f32[48,16], index: 6, kind: input, shape index: {}]
  %s7 = inlined_call_operand.hbm [shape: f32[2,3,16,16], index: 7, kind: output, shape index: {}]
  %s8 = sld [smem:[#allocation0]]
  $region73: #{tpu_custom_call.1} parent=0
    _
  %s10 = ssub.s32 1, %s8
  %s11 = scalar_select 0, %s10, %s8
  $region1: #{tpu_custom_call.1} parent=0
    #allocation2 [shape = 'u8[8192]{0}', space=vmem, size = 0x2000, scoped, tag = 'input window, operand 2, single buffered']
    #allocation3 [shape = 's32[2]{0}', space=sflag, size = 0x8, scoped, tag = 'scoped memory for tpu_custom_call.1']
    #allocation4 [shape = 's32[2]{0}', space=sflag, size = 0x8, scoped, tag = 'scoped memory for tpu_custom_call.1']
    #allocation5 [shape = 'u8[8192]{0}', space=vmem, size = 0x2000, scoped, tag = 'input window, operand 3, single buffered']
    #allocation6 [shape = 's32[1]{0}', space=sflag, size = 0x4, scoped, tag = 'scoped memory for tpu_custom_call.1']
    #allocation7 [shape = 'u8[8192]{0}', space=vmem, size = 0x2000, scoped, tag = 'input window, operand 4, single buffered']
    #allocation8 [shape = 'u8[49152]{0}', space=vmem, size = 0xc000, scoped, tag = 'output window, operand 0']
    %12 = vsyncpa [#allocation3], 0
    %13 = vsyncpa [#allocation6], 0
    %14 = vsyncpa [#allocation4], 0
    %s15 = scalar_lea.sflag [#allocation4], 1
    %16 = vsyncpa %s15, 0
    loop: start=0, step=1, limit=4
    $region2: #{tpu_custom_call.1} parent=1 // loop_pre_header
      _
    $region3: #{tpu_custom_call.1} parent=1 // loop_header
      %s18 = sphi 0, %s22
      %p19 = scmp.ge.s32.totalorder %s18, 4
      %s25 = sphi 0, %s44
      %s26 = sphi 0, %s40
      %s27 = sphi 0, %s36
      %s28 = sphi 0, %s25
      %s29 = sphi 0, %s26
      %s30 = sphi 0, %s27
      %s31 = sphi 0, %s28
      %s32 = sphi 0, %s29
      %s33 = sphi 0, %s30
      %s51 = sphi 0, %s53
      %s54 = sphi 0, %s51
      %s55 = sphi 0, %s54
      %s71 = sphi 0, %s55
      %s75 = sphi 0, %s75
      %s77 = sphi 0, %s75
      %s78 = sphi 0, %s77
      %s92 = sphi 0, %s78
      %s96 = sphi 0, %s96
      %s98 = sphi 0, %s96
      %s99 = sphi 0, %s98
      %s113 = sphi 0, %s99
      %s117 = sphi 0, %s117
      %s119 = sphi 0, %s117
      %s120 = sphi 0, %s119
      %s134 = sphi 0, %s120
      %s138 = sphi 0, %s138
      %s140 = sphi 0, %s138
      %s141 = sphi 0, %s140
      %s155 = sphi 0, %s141
      %s159 = sphi 0, %s159
      %s161 = sphi 0, %s159
      %s162 = sphi 0, %s161
      %s176 = sphi 0, %s162
      %s180 = sphi 0, %s180
      %s182 = sphi 0, %s180
      %s183 = sphi 0, %s182
      %s197 = sphi 0, %s183
      %s207 = sphi 0, %s209
      %s210 = sphi 0, %s207
      %s211 = sphi 0, %s210
      %s227 = sphi 0, %s211
    $region4: #{tpu_custom_call.1} parent=1 // loop_header_branch
      %21 = sbr.rel (%p19) target = $region8
    $region5: #{tpu_custom_call.1} parent=1 // loop_body
      %s23 = ssub.s32 %s18, 1
      %s24 = ssub.s32 %s18, 2
      %s34 = sadd.s32 1, %s27
      %p35 = scmp.ge.s32.totalorder %s34, 1
      %s36 = scalar_select %p35, 0, %s34
      %s37 = sadd.s32 1, %s26
      %s38 = scalar_select %p35, %s37, %s26
      %p39 = scmp.ge.s32.totalorder %s38, 1
      %s40 = scalar_select %p39, 0, %s38
      %s41 = sadd.s32 1, %s25
      %s42 = scalar_select %p39, %s41, %s25
      %p43 = scmp.ge.s32.totalorder %s42, 2
      %s44 = scalar_select %p43, 0, %s42
      %s45 = ssub.s32 %s25, %s44
      %s46 = ssub.s32 %s26, %s40
      %s47 = sor.u32 %s45, %s46
      %s48 = ssub.s32 %s27, %s36
      %s49 = sor.u32 %s47, %s48
      %p50 = scmp.eq.s32.totalorder %s49, 0
      %s52 = sadd.s32 %s51, 1
      %s53 = scalar_select %p50, %s51, %s52
      %p56 = pneg %p50
      %p57 = scmp.eq.s32.totalorder %s18, 1
      %p58 = por %p56, %p57
      %p59 = scmp.ne.s32.totalorder %s51, %s54
      %p60 = scmp.eq.s32.totalorder %s18, 0
      %p61 = por %p59, %p60
      %p62 = scmp.ne.s32.totalorder %s51, %s54
      %p63 = scmp.eq.s32.totalorder %s23, 1
      %p64 = por %p62, %p63
      %p65 = scmp.ne.s32.totalorder %s54, %s55
      %p66 = scmp.eq.s32.totalorder %s23, 0
      %p67 = por %p65, %p66
      %p68 = scmp.ne.s32.totalorder %s54, %s55
      %p69 = scmp.eq.s32.totalorder %s24, 1
      %p70 = por %p68, %p69
      %p72 = scmp.ne.s32.totalorder %s55, %s71
      %p73 = scmp.eq.s32.totalorder %s24, 0
      %p74 = por %p72, %p73
      %s76 = sadd.s32 %s75, 1
      %p79 = scmp.eq.s32.totalorder %s18, 1
      %p80 = scmp.ne.s32.totalorder %s75, %s77
      %p81 = scmp.eq.s32.totalorder %s18, 0
      %p82 = por %p80, %p81
      %p83 = scmp.ne.s32.totalorder %s75, %s77
      %p84 = scmp.eq.s32.totalorder %s23, 1
      %p85 = por %p83, %p84
      %p86 = scmp.ne.s32.totalorder %s77, %s78
      %p87 = scmp.eq.s32.totalorder %s23, 0
      %p88 = por %p86, %p87
      %p89 = scmp.ne.s32.totalorder %s77, %s78
      %p90 = scmp.eq.s32.totalorder %s24, 1
      %p91 = por %p89, %p90
      %p93 = scmp.ne.s32.totalorder %s78, %s92
      %p94 = scmp.eq.s32.totalorder %s24, 0
      %p95 = por %p93, %p94
      %s97 = sadd.s32 %s96, 1
      %p100 = scmp.eq.s32.totalorder %s18, 1
      %p101 = scmp.ne.s32.totalorder %s96, %s98
      %p102 = scmp.eq.s32.totalorder %s18, 0
      %p103 = por %p101, %p102
      %p104 = scmp.ne.s32.totalorder %s96, %s98
      %p105 = scmp.eq.s32.totalorder %s23, 1
      %p106 = por %p104, %p105
      %p107 = scmp.ne.s32.totalorder %s98, %s99
      %p108 = scmp.eq.s32.totalorder %s23, 0
      %p109 = por %p107, %p108
      %p110 = scmp.ne.s32.totalorder %s98, %s99
      %p111 = scmp.eq.s32.totalorder %s24, 1
      %p112 = por %p110, %p111
      %p114 = scmp.ne.s32.totalorder %s99, %s113
      %p115 = scmp.eq.s32.totalorder %s24, 0
      %p116 = por %p114, %p115
      %s118 = sadd.s32 %s117, 1
      %p121 = scmp.eq.s32.totalorder %s18, 1
      %p122 = scmp.ne.s32.totalorder %s117, %s119
      %p123 = scmp.eq.s32.totalorder %s18, 0
      %p124 = por %p122, %p123
      %p125 = scmp.ne.s32.totalorder %s117, %s119
      %p126 = scmp.eq.s32.totalorder %s23, 1
      %p127 = por %p125, %p126
      %p128 = scmp.ne.s32.totalorder %s119, %s120
      %p129 = scmp.eq.s32.totalorder %s23, 0
      %p130 = por %p128, %p129
      %p131 = scmp.ne.s32.totalorder %s119, %s120
      %p132 = scmp.eq.s32.totalorder %s24, 1
      %p133 = por %p131, %p132
      %p135 = scmp.ne.s32.totalorder %s120, %s134
      %p136 = scmp.eq.s32.totalorder %s24, 0
      %p137 = por %p135, %p136
      %s139 = sadd.s32 %s138, 1
      %p142 = scmp.eq.s32.totalorder %s18, 1
      %p143 = scmp.ne.s32.totalorder %s138, %s140
      %p144 = scmp.eq.s32.totalorder %s18, 0
      %p145 = por %p143, %p144
      %p146 = scmp.ne.s32.totalorder %s138, %s140
      %p147 = scmp.eq.s32.totalorder %s23, 1
      %p148 = por %p146, %p147
      %p149 = scmp.ne.s32.totalorder %s140, %s141
      %p150 = scmp.eq.s32.totalorder %s23, 0
      %p151 = por %p149, %p150
      %p152 = scmp.ne.s32.totalorder %s140, %s141
      %p153 = scmp.eq.s32.totalorder %s24, 1
      %p154 = por %p152, %p153
      %p156 = scmp.ne.s32.totalorder %s141, %s155
      %p157 = scmp.eq.s32.totalorder %s24, 0
      %p158 = por %p156, %p157
      %s160 = sadd.s32 %s159, 1
      %p163 = scmp.eq.s32.totalorder %s18, 1
      %p164 = scmp.ne.s32.totalorder %s159, %s161
      %p165 = scmp.eq.s32.totalorder %s18, 0
      %p166 = por %p164, %p165
      %p167 = scmp.ne.s32.totalorder %s159, %s161
      %p168 = scmp.eq.s32.totalorder %s23, 1
      %p169 = por %p167, %p168
      %p170 = scmp.ne.s32.totalorder %s161, %s162
      %p171 = scmp.eq.s32.totalorder %s23, 0
      %p172 = por %p170, %p171
      %p173 = scmp.ne.s32.totalorder %s161, %s162
      %p174 = scmp.eq.s32.totalorder %s24, 1
      %p175 = por %p173, %p174
      %p177 = scmp.ne.s32.totalorder %s162, %s176
      %p178 = scmp.eq.s32.totalorder %s24, 0
      %p179 = por %p177, %p178
      %s181 = sadd.s32 %s180, 1
      %p184 = scmp.eq.s32.totalorder %s18, 1
      %p185 = scmp.ne.s32.totalorder %s180, %s182
      %p186 = scmp.eq.s32.totalorder %s18, 0
      %p187 = por %p185, %p186
      %p188 = scmp.ne.s32.totalorder %s180, %s182
      %p189 = scmp.eq.s32.totalorder %s23, 1
      %p190 = por %p188, %p189
      %p191 = scmp.ne.s32.totalorder %s182, %s183
      %p192 = scmp.eq.s32.totalorder %s23, 0
      %p193 = por %p191, %p192
      %p194 = scmp.ne.s32.totalorder %s182, %s183
      %p195 = scmp.eq.s32.totalorder %s24, 1
      %p196 = por %p194, %p195
      %p198 = scmp.ne.s32.totalorder %s183, %s197
      %p199 = scmp.eq.s32.totalorder %s24, 0
      %p200 = por %p198, %p199
      %s201 = ssub.s32 %s25, %s44
      %s202 = ssub.s32 %s26, %s40
      %s203 = sor.u32 %s201, %s202
      %s204 = ssub.s32 %s27, %s36
      %s205 = sor.u32 %s203, %s204
      %p206 = scmp.eq.s32.totalorder %s205, 0
      %s208 = sadd.s32 %s207, 1
      %s209 = scalar_select %p206, %s207, %s208
      %p212 = pneg %p206
      %p213 = scmp.eq.s32.totalorder %s18, 1
      %p214 = por %p212, %p213
      %p215 = scmp.ne.s32.totalorder %s207, %s210
      %p216 = scmp.eq.s32.totalorder %s18, 0
      %p217 = por %p215, %p216
      %p218 = scmp.ne.s32.totalorder %s207, %s210
      %p219 = scmp.eq.s32.totalorder %s23, 1
      %p220 = por %p218, %p219
      %p221 = scmp.ne.s32.totalorder %s210, %s211
      %p222 = scmp.eq.s32.totalorder %s23, 0
      %p223 = por %p221, %p222
      %p224 = scmp.ne.s32.totalorder %s210, %s211
      %p225 = scmp.eq.s32.totalorder %s24, 1
      %p226 = por %p224, %p225
      %p228 = scmp.ne.s32.totalorder %s211, %s227
      %p229 = scmp.eq.s32.totalorder %s24, 0
      %p230 = por %p228, %p229
      %p231 = scmp.le.s32.totalorder 1, %s18
      %p232 = scmp.lt.s32.totalorder %s18, 3
      %p233 = pnand %p231, %p232
      %p234 = pneg %p233
      // Predicated region
      $region9: #{tpu_custom_call.1} parent=5 // pred_check
        _
      $region10: #{tpu_custom_call.1} parent=5 // pred_check_branch
        %236 = sbr.rel (%p233) target = $region12
      $region11: #{tpu_custom_call.1} parent=5 // pred_region
        %s237 = ssub.s32 %s18, 1
        // Predicated region
        $region13: #{tpu_custom_call.1} parent=11 // pred_check
          %p238 = pneg %p88
        $region14: #{tpu_custom_call.1} parent=11 // pred_check_branch
          %240 = sbr.rel (%p238) target = $region16
        $region15: #{tpu_custom_call.1} parent=11 // pred_region
          _
        $region16: #{tpu_custom_call.1} parent=11 // pred_fallthru
          _
        // Predicated region
        $region17: #{tpu_custom_call.1} parent=11 // pred_check
          %p241 = pneg %p109
        $region18: #{tpu_custom_call.1} parent=11 // pred_check_branch
          %243 = sbr.rel (%p241) target = $region20
        $region19: #{tpu_custom_call.1} parent=11 // pred_region
          %245 = vsyncadd [#allocation3], 0
          %s246 = sshll.u32 %s2, 4
          %s247 = int_to_ptr.hbm [resolvable:$true] %s246
          %s248 = sshll.u32 [#allocation2], 4
          %s249 = int_to_ptr.vmem [resolvable:$true] %s248
          %254 = dma.hbm_to_vmem [thread:$0]  %s247, 256, %s249, [#allocation3], 128, 128, 8
        $region20: #{tpu_custom_call.1} parent=11 // pred_fallthru
          _
        // Predicated region
        $region21: #{tpu_custom_call.1} parent=11 // pred_check
          %p255 = pneg %p130
        $region22: #{tpu_custom_call.1} parent=11 // pred_check_branch
          %257 = sbr.rel (%p255) target = $region24
        $region23: #{tpu_custom_call.1} parent=11 // pred_region
          %259 = vsyncadd [#allocation6], 0
          %s260 = sshll.u32 %s3, 4
          %s261 = int_to_ptr.hbm [resolvable:$true] %s260
          %s262 = sshll.u32 [#allocation5], 4
          %s263 = int_to_ptr.vmem [resolvable:$true] %s262
          %268 = dma.hbm_to_vmem [thread:$0]  %s261, 256, %s263, [#allocation6], 128, 128, 8
        $region24: #{tpu_custom_call.1} parent=11 // pred_fallthru
          _
        // Predicated region
        $region25: #{tpu_custom_call.1} parent=11 // pred_check
          %p269 = pneg %p151
        $region26: #{tpu_custom_call.1} parent=11 // pred_check_branch
          %271 = sbr.rel (%p269) target = $region28
        $region27: #{tpu_custom_call.1} parent=11 // pred_region
          %273 = vsyncadd [#allocation6], 0
          %s274 = sshll.u32 %s4, 4
          %s275 = int_to_ptr.hbm [resolvable:$true] %s274
          %s276 = sshll.u32 [#allocation7], 4
          %s277 = int_to_ptr.vmem [resolvable:$true] %s276
          %282 = dma.hbm_to_vmem [thread:$0]  %s275, 256, %s277, [#allocation6], 128, 128, 8
        $region28: #{tpu_custom_call.1} parent=11 // pred_fallthru
          _
        // Predicated region
        $region29: #{tpu_custom_call.1} parent=11 // pred_check
          %p283 = pneg %p172
        $region30: #{tpu_custom_call.1} parent=11 // pred_check_branch
          %285 = sbr.rel (%p283) target = $region32
        $region31: #{tpu_custom_call.1} parent=11 // pred_region
          _
        $region32: #{tpu_custom_call.1} parent=11 // pred_fallthru
          _
        // Predicated region
        $region33: #{tpu_custom_call.1} parent=11 // pred_check
          %p286 = pneg %p193
        $region34: #{tpu_custom_call.1} parent=11 // pred_check_branch
          %288 = sbr.rel (%p286) target = $region36
        $region35: #{tpu_custom_call.1} parent=11 // pred_region
          _
        $region36: #{tpu_custom_call.1} parent=11 // pred_fallthru
          _
      $region12: #{tpu_custom_call.1} parent=5 // pred_fallthru
        _
      %p289 = scmp.lt.s32.totalorder %s18, 2
      // Predicated region
      $region37: #{tpu_custom_call.1} parent=5 // pred_check
        %p290 = pneg %p289
      $region38: #{tpu_custom_call.1} parent=5 // pred_check_branch
        %292 = sbr.rel (%p290) target = $region40
      $region39: #{tpu_custom_call.1} parent=5 // pred_region
        // Predicated region
        $region41: #{tpu_custom_call.1} parent=39 // pred_check
          %p293 = pneg %p61
        $region42: #{tpu_custom_call.1} parent=39 // pred_check_branch
          %295 = sbr.rel (%p293) target = $region44
        $region43: #{tpu_custom_call.1} parent=39 // pred_region
          %s296 = smul.u32 2, %s26
          %p297 = scmp.lt.s32.totalorder %s25, 1
          %s298 = scalar_select %p297, %s25, 1
          %p299 = scmp.lt.s32.totalorder %s296, 1
          %s300 = scalar_select %p299, %s296, 1
          %p301 = scmp.lt.s32.totalorder %s27, 0
          %s302 = scalar_select %p301, %s27, 0
          %s303 = sadd.s32 %s302, %s300
          %s304 = smul.addr %s298, 6
          %s305 = sadd.s32 %s303, %s304
          %s306 = smul.addr %s305, 8
          %s307 = scalar_lea.vmem %s0, %s306
          %s308 = smul.u32 2, %s26
        $region44: #{tpu_custom_call.1} parent=39 // pred_fallthru
          _
      $region40: #{tpu_custom_call.1} parent=5 // pred_fallthru
        _
      %p309 = scmp.le.s32.totalorder 1, %s18
      %p310 = scmp.lt.s32.totalorder %s18, 3
      %p311 = pnand %p309, %p310
      %p312 = pneg %p311
      // Predicated region
      $region45: #{tpu_custom_call.1} parent=5 // pred_check
        _
      $region46: #{tpu_custom_call.1} parent=5 // pred_check_branch
        %314 = sbr.rel (%p311) target = $region48
      $region47: #{tpu_custom_call.1} parent=5 // pred_region
        %s315 = ssub.s32 %s18, 1
        // Predicated region
        $region49: #{tpu_custom_call.1} parent=47 // pred_check
          %p316 = pneg %p109
        $region50: #{tpu_custom_call.1} parent=47 // pred_check_branch
          %318 = sbr.rel (%p316) target = $region52
        $region51: #{tpu_custom_call.1} parent=47 // pred_region
          %320 = dma.done [#allocation3], 256
        $region52: #{tpu_custom_call.1} parent=47 // pred_fallthru
          _
        // Predicated region
        $region53: #{tpu_custom_call.1} parent=47 // pred_check
          %p321 = pneg %p130
        $region54: #{tpu_custom_call.1} parent=47 // pred_check_branch
          %323 = sbr.rel (%p321) target = $region56
        $region55: #{tpu_custom_call.1} parent=47 // pred_region
          %325 = dma.done [#allocation6], 256
        $region56: #{tpu_custom_call.1} parent=47 // pred_fallthru
          _
        // Predicated region
        $region57: #{tpu_custom_call.1} parent=47 // pred_check
          %p326 = pneg %p151
        $region58: #{tpu_custom_call.1} parent=47 // pred_check_branch
          %328 = sbr.rel (%p326) target = $region60
        $region59: #{tpu_custom_call.1} parent=47 // pred_region
          %330 = dma.done [#allocation6], 256
        $region60: #{tpu_custom_call.1} parent=47 // pred_fallthru
          _
        %s331 = smul.u32 2, %s29
        %p332 = scmp.lt.s32.totalorder %s28, 1
        %s333 = scalar_select %p332, %s28, 1
        %p334 = scmp.lt.s32.totalorder %s331, 1
        %s335 = scalar_select %p334, %s331, 1
        %p336 = scmp.lt.s32.totalorder %s30, 0
        %s337 = scalar_select %p336, %s30, 0
        %s338 = sadd.s32 %s337, %s335
        %s339 = smul.addr %s333, 6
        %s340 = sadd.s32 %s338, %s339
        %s341 = smul.addr %s340, 8
        %s342 = scalar_lea.vmem %s0, %s341
        %p343 = pneg %p67
        %p344 = pneg %p64
        %p345 = pneg %p88
        %p346 = pneg %p85
        %p347 = pneg %p109
        %p348 = pneg %p106
        %p349 = pneg %p130
        %p350 = pneg %p127
        %p351 = pneg %p151
        %p352 = pneg %p148
        %p353 = pneg %p172
        %p354 = pneg %p169
        %p355 = pneg %p193
        %p356 = pneg %p190
        %p357 = pneg %p223
        %p358 = pneg %p220
        %s359 = sand.u32 %s210, 1
        %s360 = scalar_lea.sflag [#allocation4], %s359
        %s361 = sand.u32 %s210, 1
        %s362 = smul.addr %s361, 48
        %s363 = scalar_lea.vmem [#allocation8], %s362
        %s364 = smul.u32 2, %s29
        %p365 = scmp.lt.s32.totalorder %s28, 1
        %s366 = scalar_select %p365, %s28, 1
        %p367 = scmp.lt.s32.totalorder %s364, 1
        %s368 = scalar_select %p367, %s364, 1
        %p369 = scmp.lt.s32.totalorder %s30, 0
        %s370 = scalar_select %p369, %s30, 0
        %s371 = sadd.s32 %s370, %s368
        %s372 = smul.addr %s366, 6
        %s373 = sadd.s32 %s371, %s372
        %s374 = smul.addr %s373, 8
        %s375 = scalar_lea.vmem %s0, %s374
        %s376 = smul.u32 2, %s29
        %s377 = smul.u32 2, %s29
        %v378 = vld [vmem:[%s375] sm:$0xff]
        %v379 = vld [vmem:[%s375 + $0x8] sm:$0xff]
        %s380 = scalar_lea.vmem %s375, 16
        %v381 = vld [vmem:[%s380] sm:$0xff]
        %v382 = vld [vmem:[%s380 + $0x8] sm:$0xff]
        %s383 = scalar_lea.vmem %s375, 32
        %v384 = vld [vmem:[%s383] sm:$0xff]
        %v385 = vld [vmem:[%s383 + $0x8] sm:$0xff]
        %v386 = vmul.f32 %v378, 76.245
        %v387 = vmul.f32 %v379, 76.245
        %v388 = vmul.f32 %v381, 149.685
        %v389 = vmul.f32 %v382, 149.685
        %v390 = vadd.f32 %v386, %v388
        %v391 = vadd.f32 %v387, %v389
        %v392 = vmul.f32 %v384, 29.07
        %v393 = vmul.f32 %v385, 29.07
        %v394 = vadd.f32 %v390, %v392
        %v395 = vadd.f32 %v391, %v393
        %v396 = vsub.f32 %v394, 128.0
        %v397 = vsub.f32 %v395, 128.0
        %v398 = vmul.f32 %v378, -43.02768
        %v399 = vmul.f32 %v379, -43.02768
        %v400 = vmul.f32 %v381, -84.47232
        %v401 = vmul.f32 %v382, -84.47232
        %v402 = vadd.f32 %v398, %v400
        %v403 = vadd.f32 %v399, %v401
        %v404 = vmul.f32 %v384, 127.5
        %v405 = vmul.f32 %v385, 127.5
        %v406 = vadd.f32 %v402, %v404
        %v407 = vadd.f32 %v403, %v405
        %v408 = vmul.f32 %v378, 127.5
        %v409 = vmul.f32 %v379, 127.5
        %v410 = vmul.f32 %v381, -106.76544
        %v411 = vmul.f32 %v382, -106.76544
        %v412 = vadd.f32 %v408, %v410
        %v413 = vadd.f32 %v409, %v411
        %v414 = vmul.f32 %v384, -20.73456
        %v415 = vmul.f32 %v385, -20.73456
        %v416 = vadd.f32 %v412, %v414
        %v417 = vadd.f32 %v413, %v415
        %v418 = vld [vmem:[%s1] sm:$0xff]
        %v419 = vld [vmem:[%s1 + $0x8] sm:$0xff]
        %v420 = vld [vmem:[#allocation2] sm:$0xff]
        %v421 = vld [vmem:[#allocation2 + $0x8] sm:$0xff]
        %v422 = vld [vmem:[#allocation5] sm:$0xff]
        %v423 = vld [vmem:[#allocation5 + $0x8] sm:$0xff]
        %v424 = vld [vmem:[#allocation7] sm:$0xff]
        %v425 = vld [vmem:[#allocation7 + $0x8] sm:$0xff]
        %vm426 = vcmask 130048
        %v428 = vsel %vm426, %v396, 0
        %v431 = vsel %vm426, %v397, 0
        %v434 = vsel %vm426, %v406, 0
        %v437 = vsel %vm426, %v407, 0
        %v440 = vsel %vm426, %v416, 0
        %v443 = vsel %vm426, %v417, 0
        %445 = vmatpush.msra.mxu0 0.0
        %446 = vmatpush.msra.mxu0 0.0
        %447 = vmatpush.msra.mxu0 0.0
        %448 = vmatpush.msra.mxu0 0.0
        %449 = vmatpush.msra.mxu0 0.0
        %450 = vmatpush.msra.mxu0 0.0
        %451 = vmatpush.msra.mxu0 0.0
        %452 = vmatpush.msra.mxu0 0.0
        %453 = vmatpush.msra.mxu0 0.0
        %454 = vmatpush.msra.mxu0 0.0
        %455 = vmatpush.msra.mxu0 0.0
        %456 = vmatpush.msra.mxu0 0.0
        %457 = vmatpush.msra.mxu0 0.0
        %458 = vmatpush.msra.mxu0 0.0
        %459 = vmatpush.msra.mxu0 %v423
        %460 = vmatpush.msra.mxu0 %v422
        %461 = vmatmul.f32.gmra.mxu0 %v428
        %v462 = vpop.f32.mrf.mxu0
        %v463 = vadd.f32 0.0, %v462
        %464 = vmatmul.f32.gmra.mxu0 %v431
        %v465 = vpop.f32.mrf.mxu0
        %v466 = vadd.f32 0.0, %v465
        %467 = vmatmul.f32.gmra.mxu0 %v434
        %v468 = vpop.f32.mrf.mxu0
        %v469 = vadd.f32 0.0, %v468
        %470 = vmatmul.f32.gmra.mxu0 %v437
        %v471 = vpop.f32.mrf.mxu0
        %v472 = vadd.f32 0.0, %v471
        %473 = vmatmul.f32.gmra.mxu0 %v440
        %v474 = vpop.f32.mrf.mxu0
        %v475 = vadd.f32 0.0, %v474
        %476 = vmatmul.f32.gmra.mxu0 %v443
        %v477 = vpop.f32.mrf.mxu0
        %v478 = vadd.f32 0.0, %v477
        %479 = vdwg.mxu0
        %v481 = vsel %vm426, %v418, 0
        %v484 = vsel %vm426, %v419, 0
        %486 = vmatpush.msra.mxu0 0.0
        %487 = vmatpush.msra.mxu0 0.0
        %488 = vmatpush.msra.mxu0 0.0
        %489 = vmatpush.msra.mxu0 0.0
        %490 = vmatpush.msra.mxu0 0.0
        %491 = vmatpush.msra.mxu0 0.0
        %492 = vmatpush.msra.mxu0 0.0
        %493 = vmatpush.msra.mxu0 0.0
        %494 = vmatpush.msra.mxu0 0.0
        %495 = vmatpush.msra.mxu0 0.0
        %496 = vmatpush.msra.mxu0 0.0
        %497 = vmatpush.msra.mxu0 0.0
        %498 = vmatpush.msra.mxu0 0.0
        %499 = vmatpush.msra.mxu0 0.0
        %500 = vmatpush.msra.mxu0 %v466
        %501 = vmatpush.msra.mxu0 %v463
        %502 = vmatmul.f32.gmra.mxu0 %v481
        %v503 = vpop.f32.mrf.mxu0
        %v504 = vadd.f32 0.0, %v503
        %505 = vmatmul.f32.gmra.mxu0 %v484
        %v506 = vpop.f32.mrf.mxu0
        %v507 = vadd.f32 0.0, %v506
        %508 = vdwg.mxu0
        %509 = vmatpush.msra.mxu0 0.0
        %510 = vmatpush.msra.mxu0 0.0
        %511 = vmatpush.msra.mxu0 0.0
        %512 = vmatpush.msra.mxu0 0.0
        %513 = vmatpush.msra.mxu0 0.0
        %514 = vmatpush.msra.mxu0 0.0
        %515 = vmatpush.msra.mxu0 0.0
        %516 = vmatpush.msra.mxu0 0.0
        %517 = vmatpush.msra.mxu0 0.0
        %518 = vmatpush.msra.mxu0 0.0
        %519 = vmatpush.msra.mxu0 0.0
        %520 = vmatpush.msra.mxu0 0.0
        %521 = vmatpush.msra.mxu0 0.0
        %522 = vmatpush.msra.mxu0 0.0
        %523 = vmatpush.msra.mxu0 %v472
        %524 = vmatpush.msra.mxu0 %v469
        %525 = vmatmul.f32.gmra.mxu0 %v481
        %v526 = vpop.f32.mrf.mxu0
        %v527 = vadd.f32 0.0, %v526
        %528 = vmatmul.f32.gmra.mxu0 %v484
        %v529 = vpop.f32.mrf.mxu0
        %v530 = vadd.f32 0.0, %v529
        %531 = vdwg.mxu0
        %532 = vmatpush.msra.mxu0 0.0
        %533 = vmatpush.msra.mxu0 0.0
        %534 = vmatpush.msra.mxu0 0.0
        %535 = vmatpush.msra.mxu0 0.0
        %536 = vmatpush.msra.mxu0 0.0
        %537 = vmatpush.msra.mxu0 0.0
        %538 = vmatpush.msra.mxu0 0.0
        %539 = vmatpush.msra.mxu0 0.0
        %540 = vmatpush.msra.mxu0 0.0
        %541 = vmatpush.msra.mxu0 0.0
        %542 = vmatpush.msra.mxu0 0.0
        %543 = vmatpush.msra.mxu0 0.0
        %544 = vmatpush.msra.mxu0 0.0
        %545 = vmatpush.msra.mxu0 0.0
        %546 = vmatpush.msra.mxu0 %v478
        %547 = vmatpush.msra.mxu0 %v475
        %548 = vmatmul.f32.gmra.mxu0 %v481
        %v549 = vpop.f32.mrf.mxu0
        %v550 = vadd.f32 0.0, %v549
        %551 = vmatmul.f32.gmra.mxu0 %v484
        %v552 = vpop.f32.mrf.mxu0
        %v553 = vadd.f32 0.0, %v552
        %554 = vdwg.mxu0
        %v555 = vld [vmem:[%s6] sm:$0xff]
        %v556 = vld [vmem:[%s6 + $0x8] sm:$0xff]
        %v557 = vld [vmem:[%s6 + $0x10] sm:$0xff]
        %v558 = vld [vmem:[%s6 + $0x18] sm:$0xff]
        %v559 = vld [vmem:[%s6 + $0x20] sm:$0xff]
        %v560 = vld [vmem:[%s6 + $0x28] sm:$0xff]
        %v561 = vmul.f32 %v504, %v555
        %v562 = vmul.f32 %v507, %v556
        %v563 = vmul.f32 %v527, %v557
        %v564 = vmul.f32 %v530, %v558
        %v565 = vmul.f32 %v550, %v559
        %v566 = vmul.f32 %v553, %v560
        %v567 = vadd.f32 %v561, 0.5
        %v568 = vadd.f32 %v562, 0.5
        %v569 = vadd.f32 %v563, 0.5
        %v570 = vadd.f32 %v564, 0.5
        %v571 = vadd.f32 %v565, 0.5
        %v572 = vadd.f32 %v566, 0.5
        %v573 = vfloor.f32 %v567
        %v574 = vfloor.f32 %v568
        %v575 = vfloor.f32 %v569
        %v576 = vfloor.f32 %v570
        %v577 = vfloor.f32 %v571
        %v578 = vfloor.f32 %v572
        %v579 = vld [vmem:[%s5] sm:$0xff]
        %v580 = vld [vmem:[%s5 + $0x8] sm:$0xff]
        %v581 = vld [vmem:[%s5 + $0x10] sm:$0xff]
        %v582 = vld [vmem:[%s5 + $0x18] sm:$0xff]
        %v583 = vld [vmem:[%s5 + $0x20] sm:$0xff]
        %v584 = vld [vmem:[%s5 + $0x28] sm:$0xff]
        %v585 = vmul.f32 %v573, %v579
        %v586 = vmul.f32 %v574, %v580
        %v587 = vmul.f32 %v575, %v581
        %v588 = vmul.f32 %v576, %v582
        %v589 = vmul.f32 %v577, %v583
        %v590 = vmul.f32 %v578, %v584
        %v592 = vsel %vm426, %v585, 0
        %v595 = vsel %vm426, %v586, 0
        %v598 = vsel %vm426, %v587, 0
        %v601 = vsel %vm426, %v588, 0
        %v604 = vsel %vm426, %v589, 0
        %v607 = vsel %vm426, %v590, 0
        %609 = vmatpush.msra.mxu0 0.0
        %610 = vmatpush.msra.mxu0 0.0
        %611 = vmatpush.msra.mxu0 0.0
        %612 = vmatpush.msra.mxu0 0.0
        %613 = vmatpush.msra.mxu0 0.0
        %614 = vmatpush.msra.mxu0 0.0
        %615 = vmatpush.msra.mxu0 0.0
        %616 = vmatpush.msra.mxu0 0.0
        %617 = vmatpush.msra.mxu0 0.0
        %618 = vmatpush.msra.mxu0 0.0
        %619 = vmatpush.msra.mxu0 0.0
        %620 = vmatpush.msra.mxu0 0.0
        %621 = vmatpush.msra.mxu0 0.0
        %622 = vmatpush.msra.mxu0 0.0
        %623 = vmatpush.msra.mxu0 %v425
        %624 = vmatpush.msra.mxu0 %v424
        %625 = vmatmul.f32.gmra.mxu0 %v592
        %v626 = vpop.f32.mrf.mxu0
        %v627 = vadd.f32 0.0, %v626
        %628 = vmatmul.f32.gmra.mxu0 %v595
        %v629 = vpop.f32.mrf.mxu0
        %v630 = vadd.f32 0.0, %v629
        %631 = vmatmul.f32.gmra.mxu0 %v598
        %v632 = vpop.f32.mrf.mxu0
        %v633 = vadd.f32 0.0, %v632
        %634 = vmatmul.f32.gmra.mxu0 %v601
        %v635 = vpop.f32.mrf.mxu0
        %v636 = vadd.f32 0.0, %v635
        %637 = vmatmul.f32.gmra.mxu0 %v604
        %v638 = vpop.f32.mrf.mxu0
        %v639 = vadd.f32 0.0, %v638
        %640 = vmatmul.f32.gmra.mxu0 %v607
        %v641 = vpop.f32.mrf.mxu0
        %v642 = vadd.f32 0.0, %v641
        %643 = vdwg.mxu0
        %v645 = vsel %vm426, %v420, 0
        %v648 = vsel %vm426, %v421, 0
        %650 = vmatpush.msra.mxu0 0.0
        %651 = vmatpush.msra.mxu0 0.0
        %652 = vmatpush.msra.mxu0 0.0
        %653 = vmatpush.msra.mxu0 0.0
        %654 = vmatpush.msra.mxu0 0.0
        %655 = vmatpush.msra.mxu0 0.0
        %656 = vmatpush.msra.mxu0 0.0
        %657 = vmatpush.msra.mxu0 0.0
        %658 = vmatpush.msra.mxu0 0.0
        %659 = vmatpush.msra.mxu0 0.0
        %660 = vmatpush.msra.mxu0 0.0
        %661 = vmatpush.msra.mxu0 0.0
        %662 = vmatpush.msra.mxu0 0.0
        %663 = vmatpush.msra.mxu0 0.0
        %664 = vmatpush.msra.mxu0 %v630
        %665 = vmatpush.msra.mxu0 %v627
        %666 = vmatmul.f32.gmra.mxu0 %v645
        %v667 = vpop.f32.mrf.mxu0
        %v668 = vadd.f32 128.0, %v667
        %669 = vmatmul.f32.gmra.mxu0 %v648
        %v670 = vpop.f32.mrf.mxu0
        %v671 = vadd.f32 128.0, %v670
        %672 = vdwg.mxu0
        %673 = vmatpush.msra.mxu0 0.0
        %674 = vmatpush.msra.mxu0 0.0
        %675 = vmatpush.msra.mxu0 0.0
        %676 = vmatpush.msra.mxu0 0.0
        %677 = vmatpush.msra.mxu0 0.0
        %678 = vmatpush.msra.mxu0 0.0
        %679 = vmatpush.msra.mxu0 0.0
        %680 = vmatpush.msra.mxu0 0.0
        %681 = vmatpush.msra.mxu0 0.0
        %682 = vmatpush.msra.mxu0 0.0
        %683 = vmatpush.msra.mxu0 0.0
        %684 = vmatpush.msra.mxu0 0.0
        %685 = vmatpush.msra.mxu0 0.0
        %686 = vmatpush.msra.mxu0 0.0
        %687 = vmatpush.msra.mxu0 %v636
        %688 = vmatpush.msra.mxu0 %v633
        %689 = vmatmul.f32.gmra.mxu0 %v645
        %v690 = vpop.f32.mrf.mxu0
        %v691 = vadd.f32 0.0, %v690
        %692 = vmatmul.f32.gmra.mxu0 %v648
        %v693 = vpop.f32.mrf.mxu0
        %v694 = vadd.f32 0.0, %v693
        %695 = vdwg.mxu0
        %696 = vmatpush.msra.mxu0 0.0
        %697 = vmatpush.msra.mxu0 0.0
        %698 = vmatpush.msra.mxu0 0.0
        %699 = vmatpush.msra.mxu0 0.0
        %700 = vmatpush.msra.mxu0 0.0
        %701 = vmatpush.msra.mxu0 0.0
        %702 = vmatpush.msra.mxu0 0.0
        %703 = vmatpush.msra.mxu0 0.0
        %704 = vmatpush.msra.mxu0 0.0
        %705 = vmatpush.msra.mxu0 0.0
        %706 = vmatpush.msra.mxu0 0.0
        %707 = vmatpush.msra.mxu0 0.0
        %708 = vmatpush.msra.mxu0 0.0
        %709 = vmatpush.msra.mxu0 0.0
        %710 = vmatpush.msra.mxu0 %v642
        %711 = vmatpush.msra.mxu0 %v639
        %712 = vmatmul.f32.gmra.mxu0 %v645
        %v713 = vpop.f32.mrf.mxu0
        %v714 = vadd.f32 0.0, %v713
        %715 = vmatmul.f32.gmra.mxu0 %v648
        %v716 = vpop.f32.mrf.mxu0
        %v717 = vadd.f32 0.0, %v716
        %718 = vdwg.mxu0
        %v719 = vmul.f32 %v714, 1.402
        %v720 = vmul.f32 %v717, 1.402
        %v721 = vadd.f32 %v668, %v719
        %v722 = vadd.f32 %v671, %v720
        %v723 = vmul.f32 %v691, 0.344136
        %v724 = vmul.f32 %v694, 0.344136
        %v725 = vsub.f32 %v668, %v723
        %v726 = vsub.f32 %v671, %v724
        %v727 = vmul.f32 %v714, 0.714136
        %v728 = vmul.f32 %v717, 0.714136
        %v729 = vsub.f32 %v725, %v727
        %v730 = vsub.f32 %v726, %v728
        %v731 = vmul.f32 %v691, 1.772
        %v732 = vmul.f32 %v694, 1.772
        %v733 = vadd.f32 %v668, %v731
        %v734 = vadd.f32 %v671, %v732
        %v735 = vadd.f32 %v721, 0.5
        %v736 = vadd.f32 %v722, 0.5
        %v737 = vfloor.f32 %v735
        %v738 = vfloor.f32 %v736
        %v739 = vmax.f32 %v737, 0.0
        %v740 = vmax.f32 %v738, 0.0
        %v741 = vmin.f32 %v739, 255.0
        %v742 = vmin.f32 %v740, 255.0
        %v743 = vmul.f32 %v741, 0.003921569
        %v744 = vmul.f32 %v742, 0.003921569
        %745 = vst.msk [vmem:[%s363] sm:$0xff] %vm426, %v743
        %746 = vst.msk [vmem:[%s363 + $0x8] sm:$0xff] %vm426, %v744
        %v747 = vadd.f32 %v729, 0.5
        %v748 = vadd.f32 %v730, 0.5
        %v749 = vfloor.f32 %v747
        %v750 = vfloor.f32 %v748
        %v751 = vmax.f32 %v749, 0.0
        %v752 = vmax.f32 %v750, 0.0
        %v753 = vmin.f32 %v751, 255.0
        %v754 = vmin.f32 %v752, 255.0
        %v755 = vmul.f32 %v753, 0.003921569
        %v756 = vmul.f32 %v754, 0.003921569
        %s757 = scalar_lea.vmem %s363, 16 [#allocation8]
        %758 = vst.msk [vmem:[%s757] sm:$0xff] %vm426, %v755
        %759 = vst.msk [vmem:[%s757 + $0x8] sm:$0xff] %vm426, %v756
        %v760 = vadd.f32 %v733, 0.5
        %v761 = vadd.f32 %v734, 0.5
        %v762 = vfloor.f32 %v760
        %v763 = vfloor.f32 %v761
        %v764 = vmax.f32 %v762, 0.0
        %v765 = vmax.f32 %v763, 0.0
        %v766 = vmin.f32 %v764, 255.0
        %v767 = vmin.f32 %v765, 255.0
        %v768 = vmul.f32 %v766, 0.003921569
        %v769 = vmul.f32 %v767, 0.003921569
        %s770 = scalar_lea.vmem %s363, 32 [#allocation8]
        %771 = vst.msk [vmem:[%s770] sm:$0xff] %vm426, %v768
        %772 = vst.msk [vmem:[%s770 + $0x8] sm:$0xff] %vm426, %v769
        %s773 = sand.u32 %s210, 1
        %s774 = scalar_lea.sflag [#allocation4], %s773
        %s775 = sand.u32 %s210, 1
        %s776 = smul.addr %s775, 48
        %s777 = scalar_lea.vmem [#allocation8], %s776
        // Predicated region
        $region61: #{tpu_custom_call.1} parent=47 // pred_check
          %p778 = pneg %p220
        $region62: #{tpu_custom_call.1} parent=47 // pred_check_branch
          %780 = sbr.rel (%p778) target = $region64
        $region63: #{tpu_custom_call.1} parent=47 // pred_region
          %s781 = smul.u32 2, %s29
          %783 = vsyncadd %s774, 0
          %s784 = sadd.s32 %s30, %s781
          %s785 = smul.addr %s28, 6
          %s786 = sadd.s32 %s784, %s785
          %s787 = smul.addr %s786, 8
          %s788 = scalar_lea.hbm %s7, %s787
          %s789 = sshll.u32 %s777, 4
          %s790 = int_to_ptr.vmem [resolvable:$true] %s789
          %s791 = sshll.u32 %s788, 4
          %s792 = int_to_ptr.hbm [resolvable:$true] %s791
          %797 = dma.vmem_to_hbm [thread:$0]  %s790, 768, %s792, %s774, 128, 128, 8
        $region64: #{tpu_custom_call.1} parent=47 // pred_fallthru
          _
      $region48: #{tpu_custom_call.1} parent=5 // pred_fallthru
        _
      %p798 = scmp.le.s32.totalorder 2, %s18
      // Predicated region
      $region65: #{tpu_custom_call.1} parent=5 // pred_check
        %p799 = pneg %p798
      $region66: #{tpu_custom_call.1} parent=5 // pred_check_branch
        %801 = sbr.rel (%p799) target = $region68
      $region67: #{tpu_custom_call.1} parent=5 // pred_region
        %s802 = ssub.s32 %s18, 2
        // Predicated region
        $region69: #{tpu_custom_call.1} parent=67 // pred_check
          %p803 = pneg %p226
        $region70: #{tpu_custom_call.1} parent=67 // pred_check_branch
          %805 = sbr.rel (%p803) target = $region72
        $region71: #{tpu_custom_call.1} parent=67 // pred_region
          %s806 = sand.u32 %s211, 1
          %s807 = scalar_lea.sflag [#allocation4], %s806
          %s808 = sand.u32 %s211, 1
          %s809 = smul.addr %s808, 48
          %s810 = scalar_lea.vmem [#allocation8], %s809
          %812 = dma.done %s807, 768
        $region72: #{tpu_custom_call.1} parent=67 // pred_fallthru
          _
      $region68: #{tpu_custom_call.1} parent=5 // pred_fallthru
        _
    $region6: #{tpu_custom_call.1} parent=1 // loop_footer
      %s22 = sadd.s32 1, %s18
    $region7: #{tpu_custom_call.1} parent=1 // loop_footer_branch
      %17 = sbr.rel target = $region3
    $region8: #{tpu_custom_call.1} parent=1 // loop_exit
      _
    %813 = vsyncpa [#allocation3], 1
    %s814 = scalar_lea.sflag [#allocation3], 1
    %815 = vsyncpa %s814, 1
    %816 = vsyncpa [#allocation6], 1
    %817 = vsyncpa [#allocation4], 1
    %s818 = scalar_lea.sflag [#allocation4], 1
    %819 = vsyncpa %s818, 1

</llo_original>
